<compile_context>
chip_gen: v7x
topology: tpu7x:2x2x1
jax: 0.10.0
libtpu: 0.0.40
codegen_flags: <defaults>
</compile_context>

<pallas_src>
import jax
import jax.numpy as jnp
from jax.experimental import pallas as pl
from jax.experimental.pallas import tpu as pltpu


def _fnet_cnn_block_kernel(x_ref, wcat_ref, bf_ref, clsl_ref, cdsd_ref,
                           gamma_ref, beta_ref, out_ref):
    # x_ref:   (NB, L, D)            unpadded input block
    # wcat_ref:(K*D, D)              fused depthwise+pointwise weight
    # bf_ref:  (1, D)                fused bias
    # clsl_ref:(2*Lh, Lh)            [cos_L; sin_L] sequence-DFT matrix
    # cdsd_ref:(2*D, D)              [cos_D; -sin_D] channel-DFT matrix
    # out_ref: (1, Lh, NB*D)         lane-concatenated output slab
    NB, L, D = x_ref.shape
    KD = wcat_ref.shape[0]
    K = KD // D
    Lh = L // 2
    pad_l = (K - 1) // 2
    pad_r = (K - 1) - pad_l

    x = x_ref[...]  # (NB, L, D)

    # --- 'same' padding handled in-kernel (no HBM pad copy in the wrapper) ----
    parts = []
    if pad_l:
        parts.append(jnp.zeros((NB, pad_l, D), jnp.float32))
    parts.append(x)
    if pad_r:
        parts.append(jnp.zeros((NB, pad_r, D), jnp.float32))
    xp = jnp.concatenate(parts, axis=1) if len(parts) > 1 else x  # (NB, L+K-1, D)

    # --- depthwise + pointwise conv fused into a single MXU matmul ------------
    # X_cat[:, :, j*D:(j+1)*D] = xp[:, j:j+L, :]  ->  (NB*L, K*D) @ (K*D, D)
    xcat = jnp.concatenate([xp[:, j:j + L, :] for j in range(K)], axis=-1)
    xrows = xcat.reshape(NB * L, KD)
    y = jnp.dot(xrows, wcat_ref[...].astype(jnp.float32),
                preferred_element_type=jnp.float32) + bf_ref[...]
    y = jnp.maximum(y, 0.0)                                   # (NB*L, D)  ReLU

    # --- MaxPool1d(kernel=2, stride=2) along sequence (no scratch) -------------
    yp = y.reshape(NB * Lh, 2, D)
    z = jnp.maximum(yp[:, 0, :], yp[:, 1, :])                 # (NB*Lh, D)

    # --- Re(FFT2(z)) = CL z CD - SL z SD  via two fused matmuls ----------------
    dft_dtype = clsl_ref.dtype
    z3 = z.reshape(NB, Lh, D).astype(dft_dtype)
    clsl = jnp.broadcast_to(clsl_ref[...], (NB, 2 * Lh, Lh))
    u = jnp.einsum('blm,bmd->bld', clsl, z3,
                   preferred_element_type=jnp.float32)        # (NB, 2Lh, D)
    uh = jnp.concatenate([u[:, :Lh, :], u[:, Lh:, :]], axis=-1)  # (NB, Lh, 2D)
    r = jnp.dot(uh.reshape(NB * Lh, 2 * D).astype(dft_dtype), cdsd_ref[...],
                preferred_element_type=jnp.float32)           # (NB*Lh, D)

    # --- single-pass LayerNorm over the channel dim D --------------------------
    mean = jnp.mean(r, axis=-1, keepdims=True)
    msq = jnp.mean(r * r, axis=-1, keepdims=True)
    var = msq - mean * mean
    out = (r - mean) * jax.lax.rsqrt(var + 1e-5)
    out = out * gamma_ref[...] + beta_ref[...]                # (NB*Lh, D)

    # --- lane-dense output slab: (Lh, NB*D); wrapper undoes the layout ---------
    o3 = out.reshape(NB, Lh, D)
    out_ref[0] = jnp.concatenate([o3[b] for b in range(NB)], axis=-1)


def _dft_cos_sin(n):
    idx = jnp.arange(n, dtype=jnp.float32)
    ang = 2.0 * jnp.pi * jnp.outer(idx, idx) / n
    return jnp.cos(ang).astype(jnp.float32), jnp.sin(ang).astype(jnp.float32)


def _pick_nb(b, max_nb=8):
    nb = min(b, max_nb)
    while b % nb:
        nb -= 1
    return nb


def fnet_cnn_block(x, w_dw, b_dw, w_pw, b_pw, gamma, beta,
                   nb=None, dft_dtype=jnp.float32):
    """x: (B, L, D) float32. Returns (B, L//2, D) float32 (eval-mode forward)."""
    B, L, D = x.shape
    K = w_dw.shape[0]
    assert L % 2 == 0, "MaxPool1d(2) path assumes even sequence length"
    Lh = L // 2

    NB = _pick_nb(B) if nb is None else nb
    assert B % NB == 0
    G = B // NB

    # Fused depthwise+pointwise weight/bias (conv is linear, so fold it once here).
    w_cat = jnp.concatenate([w_dw[j][:, None] * w_pw for j in range(K)], axis=0)  # (K*D, D)
    b_fused = b_dw @ w_pw + b_pw                                                  # (1, D)

    # Merged DFT matrices: Re(F_L z F_D) = [CL;SL]-left, [CD;-SD]-right.
    cl, sl = _dft_cos_sin(Lh)
    cd, sd = _dft_cos_sin(D)
    clsl = jnp.concatenate([cl, sl], axis=0).astype(dft_dtype)    # (2Lh, Lh)
    cdsd = jnp.concatenate([cd, -sd], axis=0).astype(dft_dtype)   # (2D, D)

    out = pl.pallas_call(
        _fnet_cnn_block_kernel,
        out_shape=jax.ShapeDtypeStruct((G, Lh, NB * D), jnp.float32),
        grid_spec=pltpu.PrefetchScalarGridSpec(
            num_scalar_prefetch=0,
            grid=(G,),
            in_specs=[
                pl.BlockSpec((NB, L, D), lambda i: (i, 0, 0)),     # x (unpadded)
                pl.BlockSpec((K * D, D), lambda i: (0, 0)),        # fused conv weight
                pl.BlockSpec((1, D), lambda i: (0, 0)),            # fused bias
                pl.BlockSpec((2 * Lh, Lh), lambda i: (0, 0)),      # [cos;sin] seq DFT
                pl.BlockSpec((2 * D, D), lambda i: (0, 0)),        # [cos;-sin] chan DFT
                pl.BlockSpec((1, D), lambda i: (0, 0)),            # layernorm gamma
                pl.BlockSpec((1, D), lambda i: (0, 0)),            # layernorm beta
            ],
            out_specs=pl.BlockSpec((1, Lh, NB * D), lambda i: (i, 0, 0)),
        ),
        # Batch steps are independent -> "parallel" lets v7x shard them over its 2 TCs.
        compiler_params=pltpu.CompilerParams(dimension_semantics=("parallel",)),
    )(x, w_cat, b_fused, clsl, cdsd, gamma, beta)

    # Undo the lane-dense slab layout: (G, Lh, NB*D) -> (B, Lh, D).
    return out.reshape(G, Lh, NB, D).transpose(0, 2, 1, 3).reshape(B, Lh, D)


def reference(x, w_dw, b_dw, w_pw, b_pw, gamma, beta):
    """Pure-JAX reference mirroring the PyTorch forward (eval mode)."""
    B, L, D = x.shape
    K = w_dw.shape[0]
    pad_l = (K - 1) // 2
    pad_r = (K - 1) - pad_l
    xp = jnp.pad(x, ((0, 0), (pad_l, pad_r), (0, 0)))
    y = sum(xp[:, j:j + L, :] * w_dw[j] for j in range(K)) + b_dw
    y = jnp.einsum('bld,de->ble', y, w_pw) + b_pw
    y = jnp.maximum(y, 0.0)
    y = jnp.maximum(y[:, 0::2, :], y[:, 1::2, :])
    y = jnp.real(jnp.fft.fft2(y, axes=(-2, -1))).astype(jnp.float32)
    mean = jnp.mean(y, axis=-1, keepdims=True)
    var = jnp.mean((y - mean) ** 2, axis=-1, keepdims=True)
    return (y - mean) / jnp.sqrt(var + 1e-5) * gamma + beta


if __name__ == "__main__":
    B, L, D, K = 2, 16, 32, 3   # batch, seq, output_dim, cnn_kernel_size

    key = jax.random.PRNGKey(0)
    ks = jax.random.split(key, 7)
    x = jax.random.normal(ks[0], (B, L, D), jnp.float32)
    # deterministic synthetic parameters (shapes follow the PyTorch module):
    #   depthwise Conv1d weight (D,1,K) -> stored as (K, D); pointwise (D,D,1) -> (D_in, D_out)
    w_dw = 0.5 * jax.random.normal(ks[1], (K, D), jnp.float32)
    b_dw = 0.1 * jax.random.normal(ks[2], (1, D), jnp.float32)
    w_pw = jax.random.normal(ks[3], (D, D), jnp.float32) / jnp.sqrt(D)
    b_pw = 0.1 * jax.random.normal(ks[4], (1, D), jnp.float32)
    gamma = 1.0 + 0.1 * jax.random.normal(ks[5], (1, D), jnp.float32)
    beta = 0.1 * jax.random.normal(ks[6], (1, D), jnp.float32)

    out = fnet_cnn_block(x, w_dw, b_dw, w_pw, b_pw, gamma, beta)
    out = jax.block_until_ready(out)

    ref = reference(x, w_dw, b_dw, w_pw, b_pw, gamma, beta)
    assert out.shape == (B, L // 2, D), out.shape
    max_err = float(jnp.max(jnp.abs(out - ref)))
    assert jnp.allclose(out, ref, atol=1e-2, rtol=1e-2), max_err
    print("KERNEL_OK")
</pallas_src>

<mosaic_0001>
module attributes {stable_mosaic.version = 11 : i64} {
  func.func @_fnet_cnn_block_kernel(%arg0: i32, %arg1: memref<2x16x32xf32, #tpu.memory_space<vmem>>, %arg2: memref<96x32xf32, #tpu.memory_space<vmem>>, %arg3: memref<1x32xf32, #tpu.memory_space<vmem>>, %arg4: memref<16x8xf32, #tpu.memory_space<vmem>>, %arg5: memref<64x32xf32, #tpu.memory_space<vmem>>, %arg6: memref<1x32xf32, #tpu.memory_space<vmem>>, %arg7: memref<1x32xf32, #tpu.memory_space<vmem>>, %arg8: memref<1x8x64xf32, #tpu.memory_space<vmem>>) attributes {dimension_semantics = [#tpu.dimension_semantics<parallel>], iteration_bounds = array<i64: 1>, scalar_prefetch = 0 : i64, scratch_operands = 0 : i64, tpu.core_type = #tpu.core_type<tc>, window_params = [{transform_indices = @transform_0, window_bounds = array<i64: 2, 16, 32>}, {pipeline_mode = #tpu.pipeline_mode<synchronous>, transform_indices = @transform_1, window_bounds = array<i64: 96, 32>}, {pipeline_mode = #tpu.pipeline_mode<synchronous>, transform_indices = @transform_2, window_bounds = array<i64: 1, 32>}, {pipeline_mode = #tpu.pipeline_mode<synchronous>, transform_indices = @transform_3, window_bounds = array<i64: 16, 8>}, {pipeline_mode = #tpu.pipeline_mode<synchronous>, transform_indices = @transform_4, window_bounds = array<i64: 64, 32>}, {pipeline_mode = #tpu.pipeline_mode<synchronous>, transform_indices = @transform_5, window_bounds = array<i64: 1, 32>}, {pipeline_mode = #tpu.pipeline_mode<synchronous>, transform_indices = @transform_6, window_bounds = array<i64: 1, 32>}, {transform_indices = @transform_7, window_bounds = array<i64: 1, 8, 64>}]} {
    %c0 = arith.constant 0 : index
    %c0_0 = arith.constant 0 : index
    %c0_1 = arith.constant 0 : index
    %0 = vector.load %arg1[%c0, %c0_0, %c0_1] : memref<2x16x32xf32, #tpu.memory_space<vmem>>, vector<2x16x32xf32>
    %cst = arith.constant 0.000000e+00 : f32
    %1 = vector.broadcast %cst : f32 to vector<2x1x32xf32>
    %cst_2 = arith.constant 0.000000e+00 : f32
    %2 = vector.broadcast %cst_2 : f32 to vector<2x1x32xf32>
    %3 = tpu.concatenate %1, %0, %2 in 1 : vector<2x1x32xf32>, vector<2x16x32xf32>, vector<2x1x32xf32> -> vector<2x18x32xf32>
    %4 = vector.extract_strided_slice %3 {offsets = [0, 0, 0], sizes = [2, 16, 32], strides = [1, 1, 1]} : vector<2x18x32xf32> to vector<2x16x32xf32>
    %5 = vector.extract_strided_slice %3 {offsets = [0, 1, 0], sizes = [2, 16, 32], strides = [1, 1, 1]} : vector<2x18x32xf32> to vector<2x16x32xf32>
    %6 = vector.extract_strided_slice %3 {offsets = [0, 2, 0], sizes = [2, 16, 32], strides = [1, 1, 1]} : vector<2x18x32xf32> to vector<2x16x32xf32>
    %7 = tpu.concatenate %4, %5, %6 in 2 : vector<2x16x32xf32>, vector<2x16x32xf32>, vector<2x16x32xf32> -> vector<2x16x96xf32>
    %8 = vector.shape_cast %7 : vector<2x16x96xf32> to vector<32x96xf32>
    %c0_3 = arith.constant 0 : index
    %c0_4 = arith.constant 0 : index
    %9 = vector.load %arg2[%c0_3, %c0_4] : memref<96x32xf32, #tpu.memory_space<vmem>>, vector<96x32xf32>
    %cst_5 = arith.constant dense<0.000000e+00> : vector<32x32xf32>
    %10 = tpu.matmul %8, %9, %cst_5 {dimension_numbers = #tpu.dot_dimension_numbers<[1], [0], [0], [1], [0, 0, 1, 1], [], []>} : vector<32x96xf32>, vector<96x32xf32>, vector<32x32xf32> -> vector<32x32xf32>
    %c0_6 = arith.constant 0 : index
    %c0_7 = arith.constant 0 : index
    %11 = vector.load %arg3[%c0_6, %c0_7] : memref<1x32xf32, #tpu.memory_space<vmem>>, vector<1x32xf32>
    %12 = vector.broadcast %11 : vector<1x32xf32> to vector<32x32xf32>
    %13 = arith.addf %10, %12 : vector<32x32xf32>
    %cst_8 = arith.constant 0.000000e+00 : f32
    %14 = vector.broadcast %cst_8 : f32 to vector<32x32xf32>
    %15 = arith.maximumf %13, %14 : vector<32x32xf32>
    %16 = vector.shape_cast %15 : vector<32x32xf32> to vector<16x2x32xf32>
    %17 = vector.extract_strided_slice %16 {offsets = [0, 0, 0], sizes = [16, 1, 32], strides = [1, 1, 1]} : vector<16x2x32xf32> to vector<16x1x32xf32>
    %18 = vector.shape_cast %17 : vector<16x1x32xf32> to vector<16x32xf32>
    %19 = vector.extract_strided_slice %16 {offsets = [0, 1, 0], sizes = [16, 1, 32], strides = [1, 1, 1]} : vector<16x2x32xf32> to vector<16x1x32xf32>
    %20 = vector.shape_cast %19 : vector<16x1x32xf32> to vector<16x32xf32>
    %21 = arith.maximumf %18, %20 : vector<16x32xf32>
    %22 = vector.shape_cast %21 : vector<16x32xf32> to vector<2x8x32xf32>
    %c0_9 = arith.constant 0 : index
    %c0_10 = arith.constant 0 : index
    %23 = vector.load %arg4[%c0_9, %c0_10] : memref<16x8xf32, #tpu.memory_space<vmem>>, vector<16x8xf32>
    %24 = vector.shape_cast %23 : vector<16x8xf32> to vector<1x16x8xf32>
    %25 = vector.broadcast %24 : vector<1x16x8xf32> to vector<2x16x8xf32>
    "tpu.trace_start"() <{level = 10 : i32, message = "blm,bmd->bld"}> : () -> ()
    %cst_11 = arith.constant dense<0.000000e+00> : vector<2x16x32xf32>
    %26 = tpu.matmul %25, %22, %cst_11 {dimension_numbers = #tpu.dot_dimension_numbers<[2], [1], [1], [2], [0, 0, 0, 1, 1, 2], [0], [0]>} : vector<2x16x8xf32>, vector<2x8x32xf32>, vector<2x16x32xf32> -> vector<2x16x32xf32>
    "tpu.trace_stop"() : () -> ()
    %27 = vector.extract_strided_slice %26 {offsets = [0, 0, 0], sizes = [2, 8, 32], strides = [1, 1, 1]} : vector<2x16x32xf32> to vector<2x8x32xf32>
    %28 = vector.extract_strided_slice %26 {offsets = [0, 8, 0], sizes = [2, 8, 32], strides = [1, 1, 1]} : vector<2x16x32xf32> to vector<2x8x32xf32>
    %29 = tpu.concatenate %27, %28 in 2 : vector<2x8x32xf32>, vector<2x8x32xf32> -> vector<2x8x64xf32>
    %30 = vector.shape_cast %29 : vector<2x8x64xf32> to vector<16x64xf32>
    %c0_12 = arith.constant 0 : index
    %c0_13 = arith.constant 0 : index
    %31 = vector.load %arg5[%c0_12, %c0_13] : memref<64x32xf32, #tpu.memory_space<vmem>>, vector<64x32xf32>
    %cst_14 = arith.constant dense<0.000000e+00> : vector<16x32xf32>
    %32 = tpu.matmul %30, %31, %cst_14 {dimension_numbers = #tpu.dot_dimension_numbers<[1], [0], [0], [1], [0, 0, 1, 1], [], []>} : vector<16x64xf32>, vector<64x32xf32>, vector<16x32xf32> -> vector<16x32xf32>
    %cst_15 = arith.constant dense<0.000000e+00> : vector<16xf32>
    %33 = vector.multi_reduction <add>, %32, %cst_15 [1] : vector<16x32xf32> to vector<16xf32>
    %34 = vector.shape_cast %33 : vector<16xf32> to vector<16x1xf32>
    %cst_16 = arith.constant 3.200000e+01 : f32
    %35 = vector.broadcast %cst_16 : f32 to vector<16x1xf32>
    %36 = arith.divf %34, %35 : vector<16x1xf32>
    %37 = arith.mulf %32, %32 : vector<16x32xf32>
    %cst_17 = arith.constant dense<0.000000e+00> : vector<16xf32>
    %38 = vector.multi_reduction <add>, %37, %cst_17 [1] : vector<16x32xf32> to vector<16xf32>
    %39 = vector.shape_cast %38 : vector<16xf32> to vector<16x1xf32>
    %cst_18 = arith.constant 3.200000e+01 : f32
    %40 = vector.broadcast %cst_18 : f32 to vector<16x1xf32>
    %41 = arith.divf %39, %40 : vector<16x1xf32>
    %42 = arith.mulf %36, %36 : vector<16x1xf32>
    %43 = arith.subf %41, %42 : vector<16x1xf32>
    %44 = vector.broadcast %36 : vector<16x1xf32> to vector<16x32xf32>
    %45 = arith.subf %32, %44 : vector<16x32xf32>
    %cst_19 = arith.constant 9.99999974E-6 : f32
    %46 = vector.broadcast %cst_19 : f32 to vector<16x1xf32>
    %47 = arith.addf %43, %46 : vector<16x1xf32>
    %48 = math.rsqrt %47 : vector<16x1xf32>
    %49 = vector.broadcast %48 : vector<16x1xf32> to vector<16x32xf32>
    %50 = arith.mulf %45, %49 : vector<16x32xf32>
    %c0_20 = arith.constant 0 : index
    %c0_21 = arith.constant 0 : index
    %51 = vector.load %arg6[%c0_20, %c0_21] : memref<1x32xf32, #tpu.memory_space<vmem>>, vector<1x32xf32>
    %52 = vector.broadcast %51 : vector<1x32xf32> to vector<16x32xf32>
    %53 = arith.mulf %50, %52 : vector<16x32xf32>
    %c0_22 = arith.constant 0 : index
    %c0_23 = arith.constant 0 : index
    %54 = vector.load %arg7[%c0_22, %c0_23] : memref<1x32xf32, #tpu.memory_space<vmem>>, vector<1x32xf32>
    %55 = vector.broadcast %54 : vector<1x32xf32> to vector<16x32xf32>
    %56 = arith.addf %53, %55 : vector<16x32xf32>
    %57 = vector.shape_cast %56 : vector<16x32xf32> to vector<2x8x32xf32>
    %58 = vector.extract_strided_slice %57 {offsets = [0, 0, 0], sizes = [1, 8, 32], strides = [1, 1, 1]} : vector<2x8x32xf32> to vector<1x8x32xf32>
    %59 = vector.shape_cast %58 : vector<1x8x32xf32> to vector<8x32xf32>
    %60 = vector.extract_strided_slice %57 {offsets = [1, 0, 0], sizes = [1, 8, 32], strides = [1, 1, 1]} : vector<2x8x32xf32> to vector<1x8x32xf32>
    %61 = vector.shape_cast %60 : vector<1x8x32xf32> to vector<8x32xf32>
    %62 = tpu.concatenate %59, %61 in 1 : vector<8x32xf32>, vector<8x32xf32> -> vector<8x64xf32>
    %c0_24 = arith.constant 0 : index
    %c0_25 = arith.constant 0 : index
    %c0_26 = arith.constant 0 : index
    %63 = vector.load %arg8[%c0_24, %c0_25, %c0_26] : memref<1x8x64xf32, #tpu.memory_space<vmem>>, vector<1x8x64xf32>
    %64 = vector.shape_cast %63 : vector<1x8x64xf32> to vector<8x64xf32>
    %65 = vector.shape_cast %62 : vector<8x64xf32> to vector<1x8x64xf32>
    tpu.vector_store %arg8[%c0_24, %c0_25, %c0_26], %65 {strides = array<i32>} : memref<1x8x64xf32, #tpu.memory_space<vmem>>, vector<1x8x64xf32>,
    return
  }
  func.func @transform_0(%arg0: i32) -> (i32, i32, i32) {
    %c0_i32 = arith.constant 0 : i32
    %c0_i32_0 = arith.constant 0 : i32
    %c0_i32_1 = arith.constant 0 : i32
    return %arg0, %c0_i32, %c0_i32_0 : i32, i32, i32
  }
  func.func @transform_1(%arg0: i32) -> (i32, i32) {
    %c0_i32 = arith.constant 0 : i32
    %c0_i32_0 = arith.constant 0 : i32
    %c0_i32_1 = arith.constant 0 : i32
    return %c0_i32, %c0_i32_0 : i32, i32
  }
  func.func @transform_2(%arg0: i32) -> (i32, i32) {
    %c0_i32 = arith.constant 0 : i32
    %c0_i32_0 = arith.constant 0 : i32
    %c0_i32_1 = arith.constant 0 : i32
    return %c0_i32, %c0_i32_0 : i32, i32
  }
  func.func @transform_3(%arg0: i32) -> (i32, i32) {
    %c0_i32 = arith.constant 0 : i32
    %c0_i32_0 = arith.constant 0 : i32
    %c0_i32_1 = arith.constant 0 : i32
    return %c0_i32, %c0_i32_0 : i32, i32
  }
  func.func @transform_4(%arg0: i32) -> (i32, i32) {
    %c0_i32 = arith.constant 0 : i32
    %c0_i32_0 = arith.constant 0 : i32
    %c0_i32_1 = arith.constant 0 : i32
    return %c0_i32, %c0_i32_0 : i32, i32
  }
  func.func @transform_5(%arg0: i32) -> (i32, i32) {
    %c0_i32 = arith.constant 0 : i32
    %c0_i32_0 = arith.constant 0 : i32
    %c0_i32_1 = arith.constant 0 : i32
    return %c0_i32, %c0_i32_0 : i32, i32
  }
  func.func @transform_6(%arg0: i32) -> (i32, i32) {
    %c0_i32 = arith.constant 0 : i32
    %c0_i32_0 = arith.constant 0 : i32
    %c0_i32_1 = arith.constant 0 : i32
    return %c0_i32, %c0_i32_0 : i32, i32
  }
  func.func @transform_7(%arg0: i32) -> (i32, i32, i32) {
    %c0_i32 = arith.constant 0 : i32
    %c0_i32_0 = arith.constant 0 : i32
    %c0_i32_1 = arith.constant 0 : i32
    return %arg0, %c0_i32, %c0_i32_0 : i32, i32, i32
  }
}

</mosaic_0001>

<llo_original>
// kernel: tpu_custom_call.1
$region0: #{tpu_custom_call.1}
  #allocation0 [shape = 'u32[]', space=smem, size = 0x4, offset = 0x4, fixed_abs, tag = 'smem constant byte address 0x4 - core index']
  #allocation1 [shape = 'u32[144,128]{1,0:T(1,128)}', space=vmem, size = 0x12000, scoped, tag = 'internal scratch']
  %s0 = inlined_call_operand.vmem [shape: f32[2,16,32], index: 0, kind: input, shape index: {}]
  %s1 = inlined_call_operand.vmem [shape: f32[96,32], index: 1, kind: input, shape index: {}]
  %s2 = inlined_call_operand.vmem [shape: f32[1,32], index: 2, kind: input, shape index: {}]
  %s3 = inlined_call_operand.vmem [shape: f32[16,8], index: 3, kind: input, shape index: {}]
  %s4 = inlined_call_operand.vmem [shape: f32[64,32], index: 4, kind: input, shape index: {}]
  %s5 = inlined_call_operand.vmem [shape: f32[1,32], index: 5, kind: input, shape index: {}]
  %s6 = inlined_call_operand.vmem [shape: f32[1,32], index: 6, kind: input, shape index: {}]
  %s7 = inlined_call_operand.hbm [shape: f32[1,8,64], index: 7, kind: output, shape index: {}]
  %s8 = sld [smem:[#allocation0]]
  $region38: #{tpu_custom_call.1} parent=0
    _
  %s10 = ssub.s32 1, %s8
  %s11 = scalar_select 0, %s10, %s8
  $region1: #{tpu_custom_call.1} parent=0
    #allocation2 [shape = 'u8[4096]{0}', space=vmem, size = 0x1000, scoped, tag = 'output window, operand 0, single buffered']
    #allocation3 [shape = 's32[1]{0}', space=sflag, size = 0x4, scoped, tag = 'scoped memory for tpu_custom_call.1']
    %12 = vsyncpa [#allocation3], 0
    // Predicated region
    $region2: #{tpu_custom_call.1} parent=1 // pred_check
      _
    $region3: #{tpu_custom_call.1} parent=1 // pred_check_branch
      %14 = sbr.rel (0) target = $region5
    $region4: #{tpu_custom_call.1} parent=1 // pred_region
      _
    $region5: #{tpu_custom_call.1} parent=1 // pred_fallthru
      _
    // Predicated region
    $region6: #{tpu_custom_call.1} parent=1 // pred_check
      _
    $region7: #{tpu_custom_call.1} parent=1 // pred_check_branch
      %16 = sbr.rel (0) target = $region9
    $region8: #{tpu_custom_call.1} parent=1 // pred_region
      _
    $region9: #{tpu_custom_call.1} parent=1 // pred_fallthru
      _
    // Predicated region
    $region10: #{tpu_custom_call.1} parent=1 // pred_check
      _
    $region11: #{tpu_custom_call.1} parent=1 // pred_check_branch
      %18 = sbr.rel (0) target = $region13
    $region12: #{tpu_custom_call.1} parent=1 // pred_region
      _
    $region13: #{tpu_custom_call.1} parent=1 // pred_fallthru
      _
    // Predicated region
    $region14: #{tpu_custom_call.1} parent=1 // pred_check
      _
    $region15: #{tpu_custom_call.1} parent=1 // pred_check_branch
      %20 = sbr.rel (0) target = $region17
    $region16: #{tpu_custom_call.1} parent=1 // pred_region
      _
    $region17: #{tpu_custom_call.1} parent=1 // pred_fallthru
      _
    // Predicated region
    $region18: #{tpu_custom_call.1} parent=1 // pred_check
      _
    $region19: #{tpu_custom_call.1} parent=1 // pred_check_branch
      %22 = sbr.rel (0) target = $region21
    $region20: #{tpu_custom_call.1} parent=1 // pred_region
      _
    $region21: #{tpu_custom_call.1} parent=1 // pred_fallthru
      _
    // Predicated region
    $region22: #{tpu_custom_call.1} parent=1 // pred_check
      _
    $region23: #{tpu_custom_call.1} parent=1 // pred_check_branch
      %24 = sbr.rel (0) target = $region25
    $region24: #{tpu_custom_call.1} parent=1 // pred_region
      _
    $region25: #{tpu_custom_call.1} parent=1 // pred_fallthru
      _
    // Predicated region
    $region26: #{tpu_custom_call.1} parent=1 // pred_check
      _
    $region27: #{tpu_custom_call.1} parent=1 // pred_check_branch
      %26 = sbr.rel (0) target = $region29
    $region28: #{tpu_custom_call.1} parent=1 // pred_region
      _
    $region29: #{tpu_custom_call.1} parent=1 // pred_fallthru
      _
    %v27 = vld [vmem:[%s0] sm:$0xff]
    %v28 = vld [vmem:[%s0 + $0x8] sm:$0xff]
    %v29 = vld [vmem:[%s0 + $0x10] sm:$0xff]
    %v30 = vld [vmem:[%s0 + $0x18] sm:$0xff]
    %vm35 = vcmask 1040384
    %v36 = vrot.slane %v27, 7
    %v37 = vrot.slane %v28, 7
    %v38 = vsel %vm35, %v36, %v37
    %v39 = vrot.slane %v29, 7
    %v40 = vrot.slane %v30, 7
    %v41 = vsel %vm35, %v39, %v40
    %v48 = vsel %vm35, 0.0, %v36
    %v49 = vsel %vm35, 0.0, %v39
    %v50 = vsel %vm35, %v37, 0.0
    %v51 = vsel %vm35, %v40, 0.0
    %vm56 = vcmask 1046528
    %v57 = vrot.slane %v48, 1
    %v58 = vrot.slane %v38, 1
    %v59 = vsel %vm56, %v57, %v58
    %v60 = vrot.slane %v50, 1
    %v61 = vsel %vm56, %v58, %v60
    %v62 = vrot.slane %v49, 1
    %v63 = vrot.slane %v41, 1
    %v64 = vsel %vm56, %v62, %v63
    %v65 = vrot.slane %v51, 1
    %v66 = vsel %vm56, %v63, %v65
    %67 = vrot.lane.b32.xlu0 %v59, 32
    %v68 = vpop.permute.xlu0 %67
    %69 = vrot.lane.b32.xlu0 %v61, 32
    %v70 = vpop.permute.xlu0 %69
    %71 = vrot.lane.b32.xlu0 %v64, 32
    %v72 = vpop.permute.xlu0 %71
    %73 = vrot.lane.b32.xlu0 %v66, 32
    %v74 = vpop.permute.xlu0 %73
    %vm79 = vcmask 1045504
    %v80 = vrot.slane %v48, 2
    %v81 = vrot.slane %v38, 2
    %v82 = vsel %vm79, %v80, %v81
    %v83 = vrot.slane %v50, 2
    %v84 = vsel %vm79, %v81, %v83
    %v85 = vrot.slane %v49, 2
    %v86 = vrot.slane %v41, 2
    %v87 = vsel %vm79, %v85, %v86
    %v88 = vrot.slane %v51, 2
    %v89 = vsel %vm79, %v86, %v88
    %90 = vrot.lane.b32.xlu0 %v82, 64
    %v91 = vpop.permute.xlu0 %90
    %92 = vrot.lane.b32.xlu0 %v84, 64
    %v93 = vpop.permute.xlu0 %92
    %94 = vrot.lane.b32.xlu0 %v87, 64
    %v95 = vpop.permute.xlu0 %94
    %96 = vrot.lane.b32.xlu0 %v89, 64
    %v97 = vpop.permute.xlu0 %96
    %vm102 = vcmask 261120
    %v103 = vsel %vm102, %v48, %v68
    %v104 = vsel %vm102, %v38, %v70
    %v105 = vsel %vm102, %v49, %v72
    %v106 = vsel %vm102, %v41, %v74
    %vm107 = vcmask 523264
    %v108 = vsel %vm107, %v103, %v91
    %v109 = vsel %vm107, %v104, %v93
    %v110 = vsel %vm107, %v105, %v95
    %v111 = vsel %vm107, %v106, %v97
    %v112 = vld [vmem:[%s1] sm:$0xff]
    %v113 = vld [vmem:[%s1 + $0x8] sm:$0xff]
    %v114 = vld [vmem:[%s1 + $0x10] sm:$0xff]
    %v115 = vld [vmem:[%s1 + $0x18] sm:$0xff]
    %v116 = vld [vmem:[%s1 + $0x20] sm:$0xff]
    %v117 = vld [vmem:[%s1 + $0x28] sm:$0xff]
    %v118 = vld [vmem:[%s1 + $0x30] sm:$0xff]
    %v119 = vld [vmem:[%s1 + $0x38] sm:$0xff]
    %v120 = vld [vmem:[%s1 + $0x40] sm:$0xff]
    %v121 = vld [vmem:[%s1 + $0x48] sm:$0xff]
    %v122 = vld [vmem:[%s1 + $0x50] sm:$0xff]
    %v123 = vld [vmem:[%s1 + $0x58] sm:$0xff]
    %v124 = vld [vmem:[%s2] sm:$0x1]
    %v126 = vlaneseq
    %v127 = vshrl.u32 %v126, 7
    %v128 = vsub.s32 0, %v127
    %v129 = vrot.slane %v124, %v128
    %vm131 = vcmask 785408
    %v133 = vsel %vm131, %v108, 0
    %v136 = vsel %vm131, %v109, 0
    %v139 = vsel %vm131, %v110, 0
    %v142 = vsel %vm131, %v111, 0
    %144 = vmatprep.subr.mxu0 0.0
    %145 = vmatpush1.msra.mxu0 %v112
    %146 = vmatprep.subr.mxu0 0.0
    %147 = vmatpush1.msra.mxu0 %v113
    %148 = vmatprep.subr.mxu0 0.0
    %149 = vmatpush1.msra.mxu0 %v114
    %150 = vmatprep.subr.mxu0 0.0
    %151 = vmatpush1.msra.mxu0 %v115
    %152 = vmatprep.subr.mxu0 0.0
    %153 = vmatpush1.msra.mxu0 %v116
    %154 = vmatprep.subr.mxu0 0.0
    %155 = vmatpush1.msra.mxu0 %v117
    %156 = vmatprep.subr.mxu0 0.0
    %157 = vmatpush1.msra.mxu0 %v118
    %158 = vmatprep.subr.mxu0 0.0
    %159 = vmatpush1.msra.mxu0 %v119
    %160 = vmatprep.subr.mxu0 0.0
    %161 = vmatpush1.msra.mxu0 %v120
    %162 = vmatprep.subr.mxu0 0.0
    %163 = vmatpush1.msra.mxu0 %v121
    %164 = vmatprep.subr.mxu0 0.0
    %165 = vmatpush1.msra.mxu0 %v122
    %166 = vmatprep.subr.mxu0 0.0
    %167 = vmatpush1.msra.mxu0 %v123
    %168 = vmatprep.subr.mxu0 0.0
    %169 = vmatpush1.msra.mxu0 0.0
    %170 = vmatprep.subr.mxu0 0.0
    %171 = vmatpush1.msra.mxu0 0.0
    %172 = vmatprep.subr.mxu0 0.0
    %173 = vmatpush1.msra.mxu0 0.0
    %174 = vmatprep.subr.mxu0 0.0
    %175 = vmatpush1.msra.mxu0 0.0
    %176 = vmatprep.subr.mxu0 0.0
    %177 = vmatpush1.msra.mxu0 0.0
    %178 = vmatprep.subr.mxu0 0.0
    %179 = vmatpush1.msra.mxu0 0.0
    %180 = vmatprep.subr.mxu0 0.0
    %181 = vmatpush1.msra.mxu0 0.0
    %182 = vmatprep.subr.mxu0 0.0
    %183 = vmatpush1.msra.mxu0 0.0
    %184 = vmatprep.subr.mxu0 0.0
    %185 = vmatpush1.msra.mxu0 0.0
    %186 = vmatprep.subr.mxu0 0.0
    %187 = vmatpush1.msra.mxu0 0.0
    %188 = vmatprep.subr.mxu0 0.0
    %189 = vmatpush1.msra.mxu0 0.0
    %190 = vmatprep.subr.mxu0 0.0
    %191 = vmatpush1.msra.mxu0 0.0
    %192 = vmatprep.subr.mxu0 0.0
    %193 = vmatpush1.msra.mxu0 0.0
    %194 = vmatprep.subr.mxu0 0.0
    %195 = vmatpush1.msra.mxu0 0.0
    %196 = vmatprep.subr.mxu0 0.0
    %197 = vmatpush1.msra.mxu0 0.0
    %198 = vmatprep.subr.mxu0 0.0
    %199 = vmatpush1.msra.mxu0 0.0
    %200 = vmatprep.subr.mxu0 0.0
    %201 = vmatpush1.msra.mxu0 0.0
    %202 = vmatprep.subr.mxu0 0.0
    %203 = vmatpush1.msra.mxu0 0.0
    %204 = vmatprep.subr.mxu0 0.0
    %205 = vmatpush1.msra.mxu0 0.0
    %206 = vmatprep.subr.mxu0 0.0
    %207 = vmatpush1.msra.mxu0 0.0
    %208 = vmatprep.mubr.f32.mxu0 0.0
    %209 = vmatmul.mubr.f32.gmra.mrb[0].mxu0 %v133
    %v210 = vpop.f32.mrb[0].mxu0
    %v211 = vadd.f32 %v129, %v210
    %v212 = vpop.f32.mrb[0].mxu0
    %213 = vmatprep.mubr.f32.mxu0 0.0
    %214 = vmatmul.mubr.f32.gmra.mrb[0].mxu0 %v136
    %v215 = vpop.f32.mrb[0].mxu0
    %v216 = vadd.f32 %v129, %v215
    %v217 = vpop.f32.mrb[0].mxu0
    %218 = vmatprep.mubr.f32.mxu0 0.0
    %219 = vmatmul.mubr.f32.gmra.mrb[0].mxu0 %v139
    %v220 = vpop.f32.mrb[0].mxu0
    %v221 = vadd.f32 %v129, %v220
    %v222 = vpop.f32.mrb[0].mxu0
    %223 = vmatprep.mubr.f32.mxu0 0.0
    %224 = vmatmul.mubr.f32.gmra.mrb[0].mxu0 %v142
    %v225 = vpop.f32.mrb[0].mxu0
    %v226 = vadd.f32 %v129, %v225
    %v227 = vpop.f32.mrb[0].mxu0
    %228 = vdwg.mxu0
    %v229 = vmax.f32 %v211, 0.0
    %v230 = vmax.f32 %v216, 0.0
    %v231 = vmax.f32 %v221, 0.0
    %v232 = vmax.f32 %v226, 0.0
    %v237 = vcombine.high %v229, %v229
    %v239 = vunpack.c.l.s4 1983009808
    %v240 = vunpack.c.0.s8 %v239
    %v241 = vlaneseq
    %v242 = vshrl.u32 %v241, 7
    %v243 = vsub.s32 %v240, %v242
    %v244 = vrot.slane %v229, %v243
    %v246 = vunpack.c.l.s4 1983009808
    %v247 = vunpack.c.0.s8 %v246
    %v248 = vlaneseq
    %v249 = vshrl.u32 %v248, 7
    %v250 = vsub.s32 %v247, %v249
    %v251 = vrot.slane %v237, %v250
    %v252 = vcombine.high %v244, %v244
    %v253 = vcombine.high %v251, %v251
    %v254 = vcombine.high %v230, %v230
    %v256 = vunpack.c.l.s4 1983009808
    %v257 = vunpack.c.0.s8 %v256
    %v258 = vlaneseq
    %v259 = vshrl.u32 %v258, 7
    %v260 = vsub.s32 %v257, %v259
    %v261 = vrot.slane %v230, %v260
    %v263 = vunpack.c.l.s4 1983009808
    %v264 = vunpack.c.0.s8 %v263
    %v265 = vlaneseq
    %v266 = vshrl.u32 %v265, 7
    %v267 = vsub.s32 %v264, %v266
    %v268 = vrot.slane %v254, %v267
    %v269 = vcombine.high %v261, %v261
    %v270 = vcombine.high %v268, %v268
    %v271 = vcombine.high %v231, %v231
    %v273 = vunpack.c.l.s4 1983009808
    %v274 = vunpack.c.0.s8 %v273
    %v275 = vlaneseq
    %v276 = vshrl.u32 %v275, 7
    %v277 = vsub.s32 %v274, %v276
    %v278 = vrot.slane %v231, %v277
    %v280 = vunpack.c.l.s4 1983009808
    %v281 = vunpack.c.0.s8 %v280
    %v282 = vlaneseq
    %v283 = vshrl.u32 %v282, 7
    %v284 = vsub.s32 %v281, %v283
    %v285 = vrot.slane %v271, %v284
    %v286 = vcombine.high %v278, %v278
    %v287 = vcombine.high %v285, %v285
    %v288 = vcombine.high %v232, %v232
    %v290 = vunpack.c.l.s4 1983009808
    %v291 = vunpack.c.0.s8 %v290
    %v292 = vlaneseq
    %v293 = vshrl.u32 %v292, 7
    %v294 = vsub.s32 %v291, %v293
    %v295 = vrot.slane %v232, %v294
    %v297 = vunpack.c.l.s4 1983009808
    %v298 = vunpack.c.0.s8 %v297
    %v299 = vlaneseq
    %v300 = vshrl.u32 %v299, 7
    %v301 = vsub.s32 %v298, %v300
    %v302 = vrot.slane %v288, %v301
    %v303 = vcombine.high %v295, %v295
    %v304 = vcombine.high %v302, %v302
    %v321 = vrot.slane %v244, 7
    %v322 = vrot.slane %v321, 2
    %v323 = vrot.slane %v252, 7
    %v324 = vrot.slane %v323, 2
    %v325 = vrot.slane %v251, 7
    %v326 = vrot.slane %v325, 2
    %v327 = vrot.slane %v253, 7
    %v328 = vrot.slane %v327, 2
    %v329 = vrot.slane %v261, 7
    %v330 = vrot.slane %v329, 2
    %v331 = vrot.slane %v269, 7
    %v332 = vrot.slane %v331, 2
    %v333 = vrot.slane %v268, 7
    %v334 = vrot.slane %v333, 2
    %v335 = vrot.slane %v270, 7
    %v336 = vrot.slane %v335, 2
    %v337 = vrot.slane %v278, 7
    %v338 = vrot.slane %v337, 2
    %v339 = vrot.slane %v286, 7
    %v340 = vrot.slane %v339, 2
    %v341 = vrot.slane %v285, 7
    %v342 = vrot.slane %v341, 2
    %v343 = vrot.slane %v287, 7
    %v344 = vrot.slane %v343, 2
    %v345 = vrot.slane %v295, 7
    %v346 = vrot.slane %v345, 2
    %v347 = vrot.slane %v303, 7
    %v348 = vrot.slane %v347, 2
    %v349 = vrot.slane %v302, 7
    %v350 = vrot.slane %v349, 2
    %v351 = vrot.slane %v304, 7
    %v352 = vrot.slane %v351, 2
    %v369 = vmax.f32 %v244, %v322
    %v370 = vmax.f32 %v252, %v324
    %v371 = vmax.f32 %v251, %v326
    %v372 = vmax.f32 %v253, %v328
    %v373 = vmax.f32 %v261, %v330
    %v374 = vmax.f32 %v269, %v332
    %v375 = vmax.f32 %v268, %v334
    %v376 = vmax.f32 %v270, %v336
    %v377 = vmax.f32 %v278, %v338
    %v378 = vmax.f32 %v286, %v340
    %v379 = vmax.f32 %v285, %v342
    %v380 = vmax.f32 %v287, %v344
    %v381 = vmax.f32 %v295, %v346
    %v382 = vmax.f32 %v303, %v348
    %v383 = vmax.f32 %v302, %v350
    %v384 = vmax.f32 %v304, %v352
    %v385 = vld [vmem:[%s3] sm:$0xff]
    %v386 = vld [vmem:[%s3 + $0x8] sm:$0xff]
    %v395 = vlaneseq
    %v396 = vshrl.u32 %v395, 7
    %v397 = vsub.s32 0, %v396
    %v398 = vrot.slane %v369, %v397
    %v399 = vlaneseq
    %v400 = vshrl.u32 %v399, 7
    %v401 = vsub.s32 0, %v400
    %v402 = vrot.slane %v370, %v401
    %v403 = vlaneseq
    %v404 = vshrl.u32 %v403, 7
    %v405 = vsub.s32 0, %v404
    %v406 = vrot.slane %v371, %v405
    %v407 = vlaneseq
    %v408 = vshrl.u32 %v407, 7
    %v409 = vsub.s32 0, %v408
    %v410 = vrot.slane %v372, %v409
    %v411 = vlaneseq
    %v412 = vshrl.u32 %v411, 7
    %v413 = vsub.s32 0, %v412
    %v414 = vrot.slane %v373, %v413
    %v415 = vlaneseq
    %v416 = vshrl.u32 %v415, 7
    %v417 = vsub.s32 0, %v416
    %v418 = vrot.slane %v374, %v417
    %v419 = vlaneseq
    %v420 = vshrl.u32 %v419, 7
    %v421 = vsub.s32 0, %v420
    %v422 = vrot.slane %v375, %v421
    %v423 = vlaneseq
    %v424 = vshrl.u32 %v423, 7
    %v425 = vsub.s32 0, %v424
    %v426 = vrot.slane %v376, %v425
    %vm427 = vcmask 1041409
    %v428 = vsel %vm427, %v402, %v398
    %vm429 = vcmask 1042434
    %v430 = vsel %vm429, %v406, %v428
    %vm431 = vcmask 1043459
    %v432 = vsel %vm431, %v410, %v430
    %vm433 = vcmask 1044484
    %v434 = vsel %vm433, %v414, %v432
    %vm435 = vcmask 1045509
    %v436 = vsel %vm435, %v418, %v434
    %vm437 = vcmask 1046534
    %v438 = vsel %vm437, %v422, %v436
    %vm439 = vcmask 1047559
    %v440 = vsel %vm439, %v426, %v438
    %vm442 = vcmask 64512
    %v444 = vsel %vm442, %v385, 0
    %v447 = vsel %vm442, %v386, 0
    %449 = vmatprep.subr.mxu0 0.0
    %450 = vmatpush1.msra.mxu0 %v440
    %451 = vmatprep.subr.mxu0 0.0
    %452 = vmatpush1.msra.mxu0 0.0
    %453 = vmatprep.subr.mxu0 0.0
    %454 = vmatpush1.msra.mxu0 0.0
    %455 = vmatprep.subr.mxu0 0.0
    %456 = vmatpush1.msra.mxu0 0.0
    %457 = vmatprep.subr.mxu0 0.0
    %458 = vmatpush1.msra.mxu0 0.0
    %459 = vmatprep.subr.mxu0 0.0
    %460 = vmatpush1.msra.mxu0 0.0
    %461 = vmatprep.subr.mxu0 0.0
    %462 = vmatpush1.msra.mxu0 0.0
    %463 = vmatprep.subr.mxu0 0.0
    %464 = vmatpush1.msra.mxu0 0.0
    %465 = vmatprep.subr.mxu0 0.0
    %466 = vmatpush1.msra.mxu0 0.0
    %467 = vmatprep.subr.mxu0 0.0
    %468 = vmatpush1.msra.mxu0 0.0
    %469 = vmatprep.subr.mxu0 0.0
    %470 = vmatpush1.msra.mxu0 0.0
    %471 = vmatprep.subr.mxu0 0.0
    %472 = vmatpush1.msra.mxu0 0.0
    %473 = vmatprep.subr.mxu0 0.0
    %474 = vmatpush1.msra.mxu0 0.0
    %475 = vmatprep.subr.mxu0 0.0
    %476 = vmatpush1.msra.mxu0 0.0
    %477 = vmatprep.subr.mxu0 0.0
    %478 = vmatpush1.msra.mxu0 0.0
    %479 = vmatprep.subr.mxu0 0.0
    %480 = vmatpush1.msra.mxu0 0.0
    %481 = vmatprep.subr.mxu0 0.0
    %482 = vmatpush1.msra.mxu0 0.0
    %483 = vmatprep.subr.mxu0 0.0
    %484 = vmatpush1.msra.mxu0 0.0
    %485 = vmatprep.subr.mxu0 0.0
    %486 = vmatpush1.msra.mxu0 0.0
    %487 = vmatprep.subr.mxu0 0.0
    %488 = vmatpush1.msra.mxu0 0.0
    %489 = vmatprep.subr.mxu0 0.0
    %490 = vmatpush1.msra.mxu0 0.0
    %491 = vmatprep.subr.mxu0 0.0
    %492 = vmatpush1.msra.mxu0 0.0
    %493 = vmatprep.subr.mxu0 0.0
    %494 = vmatpush1.msra.mxu0 0.0
    %495 = vmatprep.subr.mxu0 0.0
    %496 = vmatpush1.msra.mxu0 0.0
    %497 = vmatprep.subr.mxu0 0.0
    %498 = vmatpush1.msra.mxu0 0.0
    %499 = vmatprep.subr.mxu0 0.0
    %500 = vmatpush1.msra.mxu0 0.0
    %501 = vmatprep.subr.mxu0 0.0
    %502 = vmatpush1.msra.mxu0 0.0
    %503 = vmatprep.subr.mxu0 0.0
    %504 = vmatpush1.msra.mxu0 0.0
    %505 = vmatprep.subr.mxu0 0.0
    %506 = vmatpush1.msra.mxu0 0.0
    %507 = vmatprep.subr.mxu0 0.0
    %508 = vmatpush1.msra.mxu0 0.0
    %509 = vmatprep.subr.mxu0 0.0
    %510 = vmatpush1.msra.mxu0 0.0
    %511 = vmatprep.subr.mxu0 0.0
    %512 = vmatpush1.msra.mxu0 0.0
    %513 = vmatprep.mubr.f32.mxu0 0.0
    %514 = vmatmul.mubr.f32.gmra.mrb[0].mxu0 %v444
    %v515 = vpop.f32.mrb[0].mxu0
    %v516 = vadd.f32 0.0, %v515
    %v517 = vpop.f32.mrb[0].mxu0
    %518 = vmatprep.mubr.f32.mxu0 0.0
    %519 = vmatmul.mubr.f32.gmra.mrb[0].mxu0 %v447
    %v520 = vpop.f32.mrb[0].mxu0
    %v521 = vadd.f32 0.0, %v520
    %v522 = vpop.f32.mrb[0].mxu0
    %523 = vdwg.mxu0
    %v532 = vlaneseq
    %v533 = vshrl.u32 %v532, 7
    %v534 = vsub.s32 0, %v533
    %v535 = vrot.slane %v377, %v534
    %v536 = vlaneseq
    %v537 = vshrl.u32 %v536, 7
    %v538 = vsub.s32 0, %v537
    %v539 = vrot.slane %v378, %v538
    %v540 = vlaneseq
    %v541 = vshrl.u32 %v540, 7
    %v542 = vsub.s32 0, %v541
    %v543 = vrot.slane %v379, %v542
    %v544 = vlaneseq
    %v545 = vshrl.u32 %v544, 7
    %v546 = vsub.s32 0, %v545
    %v547 = vrot.slane %v380, %v546
    %v548 = vlaneseq
    %v549 = vshrl.u32 %v548, 7
    %v550 = vsub.s32 0, %v549
    %v551 = vrot.slane %v381, %v550
    %v552 = vlaneseq
    %v553 = vshrl.u32 %v552, 7
    %v554 = vsub.s32 0, %v553
    %v555 = vrot.slane %v382, %v554
    %v556 = vlaneseq
    %v557 = vshrl.u32 %v556, 7
    %v558 = vsub.s32 0, %v557
    %v559 = vrot.slane %v383, %v558
    %v560 = vlaneseq
    %v561 = vshrl.u32 %v560, 7
    %v562 = vsub.s32 0, %v561
    %v563 = vrot.slane %v384, %v562
    %v564 = vsel %vm427, %v539, %v535
    %v565 = vsel %vm429, %v543, %v564
    %v566 = vsel %vm431, %v547, %v565
    %v567 = vsel %vm433, %v551, %v566
    %v568 = vsel %vm435, %v555, %v567
    %v569 = vsel %vm437, %v559, %v568
    %v570 = vsel %vm439, %v563, %v569
    %572 = vmatprep.subr.mxu0 0.0
    %573 = vmatpush1.msra.mxu0 %v570
    %574 = vmatprep.subr.mxu0 0.0
    %575 = vmatpush1.msra.mxu0 0.0
    %576 = vmatprep.subr.mxu0 0.0
    %577 = vmatpush1.msra.mxu0 0.0
    %578 = vmatprep.subr.mxu0 0.0
    %579 = vmatpush1.msra.mxu0 0.0
    %580 = vmatprep.subr.mxu0 0.0
    %581 = vmatpush1.msra.mxu0 0.0
    %582 = vmatprep.subr.mxu0 0.0
    %583 = vmatpush1.msra.mxu0 0.0
    %584 = vmatprep.subr.mxu0 0.0
    %585 = vmatpush1.msra.mxu0 0.0
    %586 = vmatprep.subr.mxu0 0.0
    %587 = vmatpush1.msra.mxu0 0.0
    %588 = vmatprep.subr.mxu0 0.0
    %589 = vmatpush1.msra.mxu0 0.0
    %590 = vmatprep.subr.mxu0 0.0
    %591 = vmatpush1.msra.mxu0 0.0
    %592 = vmatprep.subr.mxu0 0.0
    %593 = vmatpush1.msra.mxu0 0.0
    %594 = vmatprep.subr.mxu0 0.0
    %595 = vmatpush1.msra.mxu0 0.0
    %596 = vmatprep.subr.mxu0 0.0
    %597 = vmatpush1.msra.mxu0 0.0
    %598 = vmatprep.subr.mxu0 0.0
    %599 = vmatpush1.msra.mxu0 0.0
    %600 = vmatprep.subr.mxu0 0.0
    %601 = vmatpush1.msra.mxu0 0.0
    %602 = vmatprep.subr.mxu0 0.0
    %603 = vmatpush1.msra.mxu0 0.0
    %604 = vmatprep.subr.mxu0 0.0
    %605 = vmatpush1.msra.mxu0 0.0
    %606 = vmatprep.subr.mxu0 0.0
    %607 = vmatpush1.msra.mxu0 0.0
    %608 = vmatprep.subr.mxu0 0.0
    %609 = vmatpush1.msra.mxu0 0.0
    %610 = vmatprep.subr.mxu0 0.0
    %611 = vmatpush1.msra.mxu0 0.0
    %612 = vmatprep.subr.mxu0 0.0
    %613 = vmatpush1.msra.mxu0 0.0
    %614 = vmatprep.subr.mxu0 0.0
    %615 = vmatpush1.msra.mxu0 0.0
    %616 = vmatprep.subr.mxu0 0.0
    %617 = vmatpush1.msra.mxu0 0.0
    %618 = vmatprep.subr.mxu0 0.0
    %619 = vmatpush1.msra.mxu0 0.0
    %620 = vmatprep.subr.mxu0 0.0
    %621 = vmatpush1.msra.mxu0 0.0
    %622 = vmatprep.subr.mxu0 0.0
    %623 = vmatpush1.msra.mxu0 0.0
    %624 = vmatprep.subr.mxu0 0.0
    %625 = vmatpush1.msra.mxu0 0.0
    %626 = vmatprep.subr.mxu0 0.0
    %627 = vmatpush1.msra.mxu0 0.0
    %628 = vmatprep.subr.mxu0 0.0
    %629 = vmatpush1.msra.mxu0 0.0
    %630 = vmatprep.subr.mxu0 0.0
    %631 = vmatpush1.msra.mxu0 0.0
    %632 = vmatprep.subr.mxu0 0.0
    %633 = vmatpush1.msra.mxu0 0.0
    %634 = vmatprep.subr.mxu0 0.0
    %635 = vmatpush1.msra.mxu0 0.0
    %636 = vmatprep.mubr.f32.mxu0 0.0
    %637 = vmatmul.mubr.f32.gmra.mrb[0].mxu0 %v444
    %v638 = vpop.f32.mrb[0].mxu0
    %v639 = vadd.f32 0.0, %v638
    %v640 = vpop.f32.mrb[0].mxu0
    %641 = vmatprep.mubr.f32.mxu0 0.0
    %642 = vmatmul.mubr.f32.gmra.mrb[0].mxu0 %v447
    %v643 = vpop.f32.mrb[0].mxu0
    %v644 = vadd.f32 0.0, %v643
    %v645 = vpop.f32.mrb[0].mxu0
    %646 = vdwg.mxu0
    %649 = vrot.lane.b32.xlu0 %v521, 32
    %v650 = vpop.permute.xlu0 %649
    %651 = vrot.lane.b32.xlu0 %v644, 32
    %v652 = vpop.permute.xlu0 %651
    %v655 = vsel %vm102, %v516, %v650
    %v656 = vsel %vm102, %v639, %v652
    %v657 = vld [vmem:[%s4] sm:$0xff]
    %v658 = vld [vmem:[%s4 + $0x8] sm:$0xff]
    %v659 = vld [vmem:[%s4 + $0x10] sm:$0xff]
    %v660 = vld [vmem:[%s4 + $0x18] sm:$0xff]
    %v661 = vld [vmem:[%s4 + $0x20] sm:$0xff]
    %v662 = vld [vmem:[%s4 + $0x28] sm:$0xff]
    %v663 = vld [vmem:[%s4 + $0x30] sm:$0xff]
    %v664 = vld [vmem:[%s4 + $0x38] sm:$0xff]
    %v666 = vsel %vm107, %v655, 0
    %v669 = vsel %vm107, %v656, 0
    %671 = vmatprep.subr.mxu0 0.0
    %672 = vmatpush1.msra.mxu0 %v657
    %673 = vmatprep.subr.mxu0 0.0
    %674 = vmatpush1.msra.mxu0 %v658
    %675 = vmatprep.subr.mxu0 0.0
    %676 = vmatpush1.msra.mxu0 %v659
    %677 = vmatprep.subr.mxu0 0.0
    %678 = vmatpush1.msra.mxu0 %v660
    %679 = vmatprep.subr.mxu0 0.0
    %680 = vmatpush1.msra.mxu0 %v661
    %681 = vmatprep.subr.mxu0 0.0
    %682 = vmatpush1.msra.mxu0 %v662
    %683 = vmatprep.subr.mxu0 0.0
    %684 = vmatpush1.msra.mxu0 %v663
    %685 = vmatprep.subr.mxu0 0.0
    %686 = vmatpush1.msra.mxu0 %v664
    %687 = vmatprep.subr.mxu0 0.0
    %688 = vmatpush1.msra.mxu0 0.0
    %689 = vmatprep.subr.mxu0 0.0
    %690 = vmatpush1.msra.mxu0 0.0
    %691 = vmatprep.subr.mxu0 0.0
    %692 = vmatpush1.msra.mxu0 0.0
    %693 = vmatprep.subr.mxu0 0.0
    %694 = vmatpush1.msra.mxu0 0.0
    %695 = vmatprep.subr.mxu0 0.0
    %696 = vmatpush1.msra.mxu0 0.0
    %697 = vmatprep.subr.mxu0 0.0
    %698 = vmatpush1.msra.mxu0 0.0
    %699 = vmatprep.subr.mxu0 0.0
    %700 = vmatpush1.msra.mxu0 0.0
    %701 = vmatprep.subr.mxu0 0.0
    %702 = vmatpush1.msra.mxu0 0.0
    %703 = vmatprep.subr.mxu0 0.0
    %704 = vmatpush1.msra.mxu0 0.0
    %705 = vmatprep.subr.mxu0 0.0
    %706 = vmatpush1.msra.mxu0 0.0
    %707 = vmatprep.subr.mxu0 0.0
    %708 = vmatpush1.msra.mxu0 0.0
    %709 = vmatprep.subr.mxu0 0.0
    %710 = vmatpush1.msra.mxu0 0.0
    %711 = vmatprep.subr.mxu0 0.0
    %712 = vmatpush1.msra.mxu0 0.0
    %713 = vmatprep.subr.mxu0 0.0
    %714 = vmatpush1.msra.mxu0 0.0
    %715 = vmatprep.subr.mxu0 0.0
    %716 = vmatpush1.msra.mxu0 0.0
    %717 = vmatprep.subr.mxu0 0.0
    %718 = vmatpush1.msra.mxu0 0.0
    %719 = vmatprep.subr.mxu0 0.0
    %720 = vmatpush1.msra.mxu0 0.0
    %721 = vmatprep.subr.mxu0 0.0
    %722 = vmatpush1.msra.mxu0 0.0
    %723 = vmatprep.subr.mxu0 0.0
    %724 = vmatpush1.msra.mxu0 0.0
    %725 = vmatprep.subr.mxu0 0.0
    %726 = vmatpush1.msra.mxu0 0.0
    %727 = vmatprep.subr.mxu0 0.0
    %728 = vmatpush1.msra.mxu0 0.0
    %729 = vmatprep.subr.mxu0 0.0
    %730 = vmatpush1.msra.mxu0 0.0
    %731 = vmatprep.subr.mxu0 0.0
    %732 = vmatpush1.msra.mxu0 0.0
    %733 = vmatprep.subr.mxu0 0.0
    %734 = vmatpush1.msra.mxu0 0.0
    %735 = vmatprep.mubr.f32.mxu0 0.0
    %736 = vmatmul.mubr.f32.gmra.mrb[0].mxu0 %v666
    %v737 = vpop.f32.mrb[0].mxu0
    %v738 = vadd.f32 0.0, %v737
    %v739 = vpop.f32.mrb[0].mxu0
    %740 = vmatprep.mubr.f32.mxu0 0.0
    %741 = vmatmul.mubr.f32.gmra.mrb[0].mxu0 %v669
    %v742 = vpop.f32.mrb[0].mxu0
    %v743 = vadd.f32 0.0, %v742
    %v744 = vpop.f32.mrb[0].mxu0
    %745 = vdwg.mxu0
    %v746 = vsel %vm102, %v738, 0.0
    %747 = vadd.xlane.f32.xlu0 %v746
    %v748 = vpop.xlane.xlu0 %747
    %v749 = vsel %vm102, %v743, 0.0
    %750 = vadd.xlane.f32.xlu0 %v749
    %v751 = vpop.xlane.xlu0 %750
    %v752 = vrcp.pop 32.0
    %v753 = vmul.f32 %v748, %v752
    %v754 = vmul.f32 %v751, %v752
    %v755 = vmul.f32 %v738, %v738
    %v756 = vmul.f32 %v743, %v743
    %v757 = vsel %vm102, %v755, 0.0
    %758 = vadd.xlane.f32.xlu0 %v757
    %v759 = vpop.xlane.xlu0 %758
    %v760 = vsel %vm102, %v756, 0.0
    %761 = vadd.xlane.f32.xlu0 %v760
    %v762 = vpop.xlane.xlu0 %761
    %v763 = vmul.f32 %v759, %v752
    %v764 = vmul.f32 %v762, %v752
    %v765 = vmul.f32 %v753, %v753
    %v766 = vmul.f32 %v754, %v754
    %v767 = vsub.f32 %v763, %v765
    %v768 = vsub.f32 %v764, %v766
    %v769 = vsub.f32 %v738, %v753
    %v770 = vsub.f32 %v743, %v754
    %v771 = vadd.f32 %v767, 1e-05
    %v772 = vadd.f32 %v768, 1e-05
    %v773 = vrsqrt.pop %v771
    %v774 = vrsqrt.pop %v772
    %v775 = vmul.f32 %v769, %v773
    %v776 = vmul.f32 %v770, %v774
    %v777 = vld [vmem:[%s5] sm:$0x1]
    %v779 = vlaneseq
    %v780 = vshrl.u32 %v779, 7
    %v781 = vsub.s32 0, %v780
    %v782 = vrot.slane %v777, %v781
    %v784 = vmul.f32 %v775, %v782
    %v785 = vmul.f32 %v776, %v782
    %v786 = vld [vmem:[%s6] sm:$0x1]
    %v788 = vlaneseq
    %v789 = vshrl.u32 %v788, 7
    %v790 = vsub.s32 0, %v789
    %v791 = vrot.slane %v786, %v790
    %v793 = vadd.f32 %v784, %v791
    %v794 = vadd.f32 %v785, %v791
    %796 = vrot.lane.b32.xlu0 %v794, 32
    %v797 = vpop.permute.xlu0 %796
    %v799 = vsel %vm102, %v793, %v797
    %800 = vst.msk [vmem:[#allocation2] sm:$0xff] %vm107, %v799
    // Predicated region
    $region30: #{tpu_custom_call.1} parent=1 // pred_check
      _
    $region31: #{tpu_custom_call.1} parent=1 // pred_check_branch
      %802 = sbr.rel (0) target = $region33
    $region32: #{tpu_custom_call.1} parent=1 // pred_region
      %s804 = ssub.s32 128, 128
      %805 = vsyncadd [#allocation3], %s804
      %s807 = sshll.u32 [#allocation2], 4
      %s808 = int_to_ptr.vmem [resolvable:$true] %s807
      %810 = dma.vmem_to_hbm [thread:$0]  %s808, 128, %s7, [#allocation3]
    $region33: #{tpu_custom_call.1} parent=1 // pred_fallthru
      _
    // Predicated region
    $region34: #{tpu_custom_call.1} parent=1 // pred_check
      _
    $region35: #{tpu_custom_call.1} parent=1 // pred_check_branch
      %812 = sbr.rel (0) target = $region37
    $region36: #{tpu_custom_call.1} parent=1 // pred_region
      %813 = dma.done [#allocation3], 128
    $region37: #{tpu_custom_call.1} parent=1 // pred_fallthru
      _
    %814 = vsyncpa [#allocation3], 1

</llo_original>
